<compile_context>
chip_gen: v6e
topology: v6e:2x2x1
jax: 0.10.0
libtpu: 0.0.40
codegen_flags: <defaults>
</compile_context>

<pallas_src>
import math

import jax
import jax.numpy as jnp
from jax.experimental import pallas as pl
from jax.experimental.pallas import tpu as pltpu

_LANE = 128


def _cdiv(a: int, b: int) -> int:
    return -(-a // b)


def _round_up(a: int, m: int) -> int:
    return _cdiv(a, m) * m


def _vmem_budget():
    """(per-input-block byte budget, vmem_limit_bytes) by TPU generation."""
    try:
        cap = pltpu.get_tpu_info().vmem_capacity_bytes
    except Exception:
        # Unknown target: stay safely under every generation's default scoped limit.
        return 4 * 1024 * 1024, None
    if cap <= 96 * 1024 * 1024:
        # v7x: 64 MiB physical VMEM per TensorCore.
        return 12 * 1024 * 1024, 48 * 1024 * 1024
    # v5e / v6e: 128 MiB physical VMEM.
    return 12 * 1024 * 1024, 64 * 1024 * 1024


def _make_kernel(acc_dtype, acc_is_out, num_c, c_total, tile_c, keepdims):
    """Build the kernel body.  Returns (kernel_fn, needs_scratch)."""
    mask_tail = num_c * tile_c > c_total  # ragged channel tail must be masked

    def partial_sum(x_ref):
        x = x_ref[...]
        if mask_tail:
            ch = jax.lax.broadcasted_iota(jnp.int32, x.shape, 1)
            ch = ch + pl.program_id(2) * tile_c
            # Padded channels hold unspecified data -> zero them before adding.
            x = jnp.where(ch < c_total, x, jnp.zeros((), x.dtype))
        # Accumulate in acc_dtype without materializing an upcast copy of x.
        return jnp.sum(x, axis=1, dtype=acc_dtype, keepdims=keepdims)

    if num_c == 1:
        # Single channel chunk: no accumulation across grid steps at all.
        def kernel(x_ref, o_ref):
            o_ref[...] = partial_sum(x_ref).astype(o_ref.dtype)

        return kernel, False

    if acc_is_out:
        # f32 / i32 inputs: accumulate directly into the resident output block.
        def kernel(x_ref, o_ref):
            @pl.when(pl.program_id(2) == 0)
            def _():
                o_ref[...] = jnp.zeros_like(o_ref)

            o_ref[...] += partial_sum(x_ref)

        return kernel, False

    # Low-precision inputs (bf16/fp16/int8...): f32/i32 scratch accumulator.
    def kernel(x_ref, o_ref, acc_ref):
        c = pl.program_id(2)

        @pl.when(c == 0)
        def _():
            acc_ref[...] = jnp.zeros_like(acc_ref)

        acc_ref[...] += partial_sum(x_ref)

        @pl.when(c == pl.num_programs(2) - 1)
        def _():
            o_ref[...] = acc_ref[...].astype(o_ref.dtype)

    return kernel, True


def sum_dim1(x: jax.Array) -> jax.Array:
    """Equivalent of torch.sum(x, dim=1) for arrays of rank >= 2 (e.g. NCHW)."""
    if x.ndim < 2:
        raise ValueError("sum_dim1 expects an array of rank >= 2")
    if x.dtype == jnp.bool_:
        # TODO(synk): torch.sum promotes bool/int inputs to int64; we use int32.
        x = x.astype(jnp.int32)

    B, C = x.shape[0], x.shape[1]
    rest = x.shape[2:]
    S = math.prod(rest) if rest else 1
    out_dtype = x.dtype
    out_shape = (B,) + rest

    if B == 0 or S == 0 or C == 0:
        return jnp.zeros(out_shape, out_dtype)

    if jnp.issubdtype(x.dtype, jnp.floating):
        acc_dtype = jnp.promote_types(x.dtype, jnp.float32)
    else:
        acc_dtype = jnp.int32
    acc_is_out = jnp.dtype(out_dtype) == jnp.dtype(acc_dtype)
    itemsize = jnp.dtype(x.dtype).itemsize
    packed = max(8, 32 // itemsize)  # sublane multiple for this dtype (8/16/32)

    budget, vmem_limit = _vmem_budget()

    # Free reshape: only trailing dims are collapsed, no data movement.
    x3 = x.reshape(B, C, S)

    # Budget math per spatial element includes the (<=8 sublane-padded) output row.
    cost_c = C + 8

    # ---- Spatial tiling: prefer the full extent; else multiple-of-128 tiles. ----
    if cost_c * S * itemsize <= budget:
        tile_s = S
    elif cost_c * _LANE * itemsize <= budget:
        tile_s = (budget // (cost_c * itemsize)) // _LANE * _LANE
        tile_s = min(tile_s, _round_up(S, _LANE))
    else:
        tile_s = _LANE
    num_s = _cdiv(S, tile_s)

    # ---- Channel chunking only when forced (huge C at minimal spatial tile). ----
    if C * tile_s * itemsize <= budget:
        tile_c = C
    else:
        tile_c = max(packed, (budget // (tile_s * itemsize)) // packed * packed)
        tile_c = min(tile_c, _round_up(C, packed))
    num_c = _cdiv(C, tile_c)

    # ---- Batch grouping: amortize per-grid-step overhead for tiny slabs. ----
    if num_s == 1 and num_c == 1:
        nb_fit = max(1, budget // (cost_c * S * itemsize))
        if nb_fit >= B:
            tb = B
        elif nb_fit >= 8:
            tb = min((nb_fit // 8) * 8, _round_up(B, 8))  # sublane-dense output tiles
        else:
            tb = 1  # per-batch blocks are already >= budget/8 bytes
    else:
        tb = 1
    num_b = _cdiv(B, tb)

    # ---- Megacore nudge: ensure >= 2 parallel grid steps for MiB-scale inputs. ----
    total_bytes = B * C * S * itemsize
    if num_b == 1 and num_s == 1 and num_c == 1 and total_bytes >= (1 << 20):
        if B >= 16:
            tb = _round_up(_cdiv(B, 2), 8)
            num_b = _cdiv(B, tb)
        elif S >= 2 * _LANE:
            tile_s = _round_up(_cdiv(S, 2), _LANE)
            num_s = _cdiv(S, tile_s)

    # ---- Output layout: keep the minor-two block dims (8,128)-rule compliant. ----
    # Either the batch tile is B / a multiple of 8 (2-D output, dense stores), or
    # the batch tile is 1 and batch stays on an unconstrained leading axis (3-D).
    squeeze_mid = (tb == 1) and (B > 1)
    if squeeze_mid:
        out_struct = jax.ShapeDtypeStruct((B, 1, S), out_dtype)
        out_block = (1, 1, tile_s)
        out_map = lambda b, s, c: (b, 0, s)
        acc_shape = (1, 1, tile_s)
    else:
        out_struct = jax.ShapeDtypeStruct((B, S), out_dtype)
        out_block = (tb, tile_s)
        out_map = lambda b, s, c: (b, s)
        acc_shape = (tb, tile_s)

    kernel, needs_scratch = _make_kernel(
        acc_dtype, acc_is_out, num_c, C, tile_c, keepdims=squeeze_mid)
    scratch = [pltpu.VMEM(acc_shape, acc_dtype)] if needs_scratch else []

    compiler_kwargs = dict(dimension_semantics=("parallel", "parallel", "arbitrary"))
    if vmem_limit is not None:
        compiler_kwargs["vmem_limit_bytes"] = vmem_limit

    out = pl.pallas_call(
        kernel,
        out_shape=out_struct,
        grid_spec=pltpu.PrefetchScalarGridSpec(
            num_scalar_prefetch=0,
            grid=(num_b, num_s, num_c),
            in_specs=[pl.BlockSpec((tb, tile_c, tile_s),
                                   lambda b, s, c: (b, c, s))],
            out_specs=pl.BlockSpec(out_block, out_map),
            scratch_shapes=scratch,
        ),
        compiler_params=pltpu.CompilerParams(**compiler_kwargs),
        cost_estimate=pl.CostEstimate(
            flops=int(B * C * S),
            transcendentals=0,
            bytes_accessed=int(total_bytes + B * S * jnp.dtype(out_dtype).itemsize),
        ),
    )(x3)

    return out.reshape(out_shape)


if __name__ == "__main__":
    key = jax.random.PRNGKey(0)
    # Small NCHW input consistent with the module's typical LRP usage.
    x = jax.random.normal(key, (2, 4, 16, 16), dtype=jnp.float32)

    out = jax.block_until_ready(sum_dim1(x))

    # Correctness check against plain JAX reference (== torch.sum(x, dim=1)).
    ref = jnp.sum(x, axis=1)
    assert out.shape == ref.shape, (out.shape, ref.shape)
    assert out.dtype == ref.dtype, (out.dtype, ref.dtype)
    assert jnp.allclose(out, ref, atol=1e-5, rtol=1e-5), "mismatch vs reference"

    print("KERNEL_OK")
</pallas_src>

<mosaic_0001>
module attributes {stable_mosaic.version = 11 : i64} {
  func.func @kernel(%arg0: i32, %arg1: i32, %arg2: i32, %arg3: memref<2x4x256xf32, #tpu.memory_space<vmem>>, %arg4: memref<2x256xf32, #tpu.memory_space<vmem>>) attributes {dimension_semantics = [#tpu.dimension_semantics<parallel>, #tpu.dimension_semantics<parallel>, #tpu.dimension_semantics<arbitrary>], iteration_bounds = array<i64: 1, 1, 1>, scalar_prefetch = 0 : i64, scratch_operands = 0 : i64, tpu.core_type = #tpu.core_type<tc>, window_params = [{transform_indices = @transform_0, window_bounds = array<i64: 2, 4, 256>}, {transform_indices = @transform_1, window_bounds = array<i64: 2, 256>}]} {
    %c0 = arith.constant 0 : index
    %c0_0 = arith.constant 0 : index
    %c0_1 = arith.constant 0 : index
    %0 = vector.load %arg3[%c0, %c0_0, %c0_1] : memref<2x4x256xf32, #tpu.memory_space<vmem>>, vector<2x4x256xf32>
    %cst = arith.constant dense<0.000000e+00> : vector<2x256xf32>
    %1 = vector.multi_reduction <add>, %0, %cst [1] : vector<2x4x256xf32> to vector<2x256xf32>
    %c0_2 = arith.constant 0 : index
    %c0_3 = arith.constant 0 : index
    %2 = vector.load %arg4[%c0_2, %c0_3] : memref<2x256xf32, #tpu.memory_space<vmem>>, vector<2x256xf32>
    tpu.vector_store %arg4[%c0_2, %c0_3], %1 {strides = array<i32>} : memref<2x256xf32, #tpu.memory_space<vmem>>, vector<2x256xf32>,
    return
  }
  func.func @transform_0(%arg0: i32, %arg1: i32, %arg2: i32) -> (i32, i32, i32) {
    %c0_i32 = arith.constant 0 : i32
    return %arg0, %arg2, %arg1 : i32, i32, i32
  }
  func.func @transform_1(%arg0: i32, %arg1: i32, %arg2: i32) -> (i32, i32) {
    %c0_i32 = arith.constant 0 : i32
    return %arg0, %arg1 : i32, i32
  }
}

</mosaic_0001>

<llo_original>
// kernel: tpu_custom_call.1
$region0: #{tpu_custom_call.1}
  #allocation0 [shape = 'u32[]', space=smem, size = 0x4, offset = 0x4, fixed_abs, tag = 'smem constant byte address 0x4 - core index']
  #allocation1 [shape = 'u32[144,128]{1,0:T(1,128)}', space=vmem, size = 0x12000, scoped, tag = 'internal scratch']
  %s0 = inlined_call_operand.hbm [shape: f32[2,4,256], index: 0, kind: input, shape index: {}]
  %s1 = inlined_call_operand.hbm [shape: f32[2,256], index: 1, kind: output, shape index: {}]
  %s2 = sld [smem:[#allocation0]]
  $region18: #{tpu_custom_call.1} parent=0
    _
  %s4 = ssub.s32 1, %s2
  %s5 = scalar_select 0, %s4, %s2
  $region1: #{tpu_custom_call.1} parent=0
    #allocation2 [shape = 'u8[8192]{0}', space=vmem, size = 0x2000, scoped, tag = 'input window, operand 0, single buffered']
    #allocation3 [shape = 's32[1]{0}', space=sflag, size = 0x4, scoped, tag = 'scoped memory for tpu_custom_call.1']
    #allocation4 [shape = 's32[1]{0}', space=sflag, size = 0x4, scoped, tag = 'scoped memory for tpu_custom_call.1']
    #allocation5 [shape = 'u8[2048]{0}', space=vmem, size = 0x800, scoped, tag = 'output window, operand 0, single buffered']
    %6 = vsyncpa [#allocation3], 0
    %7 = vsyncpa [#allocation4], 0
    // Predicated region
    $region2: #{tpu_custom_call.1} parent=1 // pred_check
      _
    $region3: #{tpu_custom_call.1} parent=1 // pred_check_branch
      %9 = sbr.rel (0) target = $region5
    $region4: #{tpu_custom_call.1} parent=1 // pred_region
      %s11 = ssub.s32 256, 256
      %12 = vsyncadd [#allocation3], %s11
      %s13 = sshll.u32 [#allocation2], 4
      %s14 = int_to_ptr.vmem [resolvable:$true] %s13
      %19 = dma.hbm_to_vmem [thread:$0]  %s0, 256, %s14, [#allocation3], 128, 128, 8
    $region5: #{tpu_custom_call.1} parent=1 // pred_fallthru
      _
    // Predicated region
    $region6: #{tpu_custom_call.1} parent=1 // pred_check
      _
    $region7: #{tpu_custom_call.1} parent=1 // pred_check_branch
      %21 = sbr.rel (0) target = $region9
    $region8: #{tpu_custom_call.1} parent=1 // pred_region
      %22 = dma.done [#allocation3], 256
    $region9: #{tpu_custom_call.1} parent=1 // pred_fallthru
      _
    %v23 = vld [vmem:[#allocation2] sm:$0xff]
    %v24 = vld [vmem:[#allocation2 + $0x8] sm:$0xff]
    %v27 = vcombine.high %v23, %v23
    %v28 = vcombine.high %v24, %v24
    %vm31 = vcmask 1043456
    %v32 = vsel %vm31, %v23, 0.0
    %v33 = vrot.slane %v32, 4
    %v34 = vadd.f32 %v32, %v33
    %v35 = vrot.slane %v34, 2
    %v36 = vadd.f32 %v34, %v35
    %v37 = vrot.slane %v36, 1
    %v38 = vadd.f32 %v36, %v37
    %v39 = vsel %vm31, %v27, 0.0
    %v40 = vrot.slane %v39, 4
    %v41 = vadd.f32 %v39, %v40
    %v42 = vrot.slane %v41, 2
    %v43 = vadd.f32 %v41, %v42
    %v44 = vrot.slane %v43, 1
    %v45 = vadd.f32 %v43, %v44
    %v46 = vsel %vm31, %v24, 0.0
    %v47 = vrot.slane %v46, 4
    %v48 = vadd.f32 %v46, %v47
    %v49 = vrot.slane %v48, 2
    %v50 = vadd.f32 %v48, %v49
    %v51 = vrot.slane %v50, 1
    %v52 = vadd.f32 %v50, %v51
    %v53 = vsel %vm31, %v28, 0.0
    %v54 = vrot.slane %v53, 4
    %v55 = vadd.f32 %v53, %v54
    %v56 = vrot.slane %v55, 2
    %v57 = vadd.f32 %v55, %v56
    %v58 = vrot.slane %v57, 1
    %v59 = vadd.f32 %v57, %v58
    %v64 = vcombine.low %v38, %v45
    %v66 = vunpack.c.l.s4 1983009808
    %v67 = vunpack.c.0.s8 %v66
    %v68 = vlaneseq
    %v69 = vshrl.u32 %v68, 7
    %v70 = vsub.s32 %v67, %v69
    %v71 = vrot.slane %v64, %v70
    %v72 = vcombine.low %v52, %v59
    %v74 = vunpack.c.l.s4 1983009808
    %v75 = vunpack.c.0.s8 %v74
    %v76 = vlaneseq
    %v77 = vshrl.u32 %v76, 7
    %v78 = vsub.s32 %v75, %v77
    %v79 = vrot.slane %v72, %v78
    %vm80 = vcmask 1044484
    %v81 = vsel %vm80, %v71, %v71
    %vm82 = vcmask 1046534
    %v83 = vsel %vm82, %v71, %v81
    %v84 = vrot.slane %v79, 7
    %vm85 = vcmask 1041409
    %v86 = vsel %vm85, %v84, %v83
    %vm87 = vcmask 1043459
    %v88 = vsel %vm87, %v84, %v86
    %vm89 = vcmask 1045509
    %v90 = vsel %vm89, %v84, %v88
    %vm91 = vcmask 1047559
    %v92 = vsel %vm91, %v84, %v90
    %94 = vst [vmem:[#allocation5] sm:$0xf] %v92
    // Predicated region
    $region10: #{tpu_custom_call.1} parent=1 // pred_check
      _
    $region11: #{tpu_custom_call.1} parent=1 // pred_check_branch
      %96 = sbr.rel (0) target = $region13
    $region12: #{tpu_custom_call.1} parent=1 // pred_region
      %s98 = ssub.s32 64, 64
      %99 = vsyncadd [#allocation4], %s98
      %s101 = sshll.u32 [#allocation5], 4
      %s102 = int_to_ptr.vmem [resolvable:$true] %s101
      %104 = dma.vmem_to_hbm [thread:$0]  %s102, 64, %s1, [#allocation4]
    $region13: #{tpu_custom_call.1} parent=1 // pred_fallthru
      _
    // Predicated region
    $region14: #{tpu_custom_call.1} parent=1 // pred_check
      _
    $region15: #{tpu_custom_call.1} parent=1 // pred_check_branch
      %106 = sbr.rel (0) target = $region17
    $region16: #{tpu_custom_call.1} parent=1 // pred_region
      %107 = dma.done [#allocation4], 64
    $region17: #{tpu_custom_call.1} parent=1 // pred_fallthru
      _
    %108 = vsyncpa [#allocation3], 1
    %109 = vsyncpa [#allocation4], 1

</llo_original>
